<compile_context>
chip_gen: v7x
topology: tpu7x:2x2x1
jax: 0.10.0
libtpu: 0.0.40
codegen_flags: <defaults>
</compile_context>

<pallas_src>
import functools
import math

import jax
import jax.numpy as jnp
from jax.experimental import pallas as pl
from jax.experimental.pallas import tpu as pltpu


def _round_up(x: int, mult: int) -> int:
    return ((x + mult - 1) // mult) * mult


def _vmem_capacity_bytes() -> int:
    """Physical VMEM of the current TPU; conservative v7x default on failure."""
    try:
        return int(pltpu.get_tpu_info().vmem_capacity_bytes)
    except Exception:
        return 64 << 20  # v7x per-TensorCore VMEM (smallest of the three gens)


def _bytes_needed(tm: int, d_in: int, tn: int, x_item: int, w_item: int) -> int:
    # Double-buffered pipeline blocks (x counted twice even when its block
    # index is constant, to be conservative) + f32 epilogue temporaries.
    blocks = 2 * tm * d_in * x_item + 2 * d_in * tn * w_item + 2 * tm * tn * 4
    temps = 3 * tm * tn * 4 + d_in * tn * 4
    return blocks + temps


def arcface_kernel(xn_ref, w_ref, o_ref, *, s_cos_m, s_sin_m, mxu_dtype):
    """Compute one (TM, TN) output tile.

    xn_ref : (TM, D_in)  pre-normalized rows, already in mxu_dtype
    w_ref  : (D_in, TN)  raw (un-normalized) weight columns, full D_in resident
    o_ref  : (TM, TN)    s * cos(acos(clamp(cosine)) + m)
    """
    w = w_ref[...]

    # Column L2 inverse norms in f32 from the resident raw tile.  The
    # normalization is folded into the epilogue as a (1, TN) scale; no
    # normalized copy of the W tile is ever materialized.
    w32 = w.astype(jnp.float32)
    inv_wn = 1.0 / jnp.maximum(
        jnp.sqrt(jnp.sum(w32 * w32, axis=0, keepdims=True)), 1e-12
    )

    # MXU matmul on raw (mxu_dtype) operands, f32 accumulation.
    acc = jnp.dot(
        xn_ref[...], w.astype(mxu_dtype), preferred_element_type=jnp.float32
    )

    # cosine = acc * 1/||w||; cos(acos(c) + m) = c*cos(m) - sqrt(1-c^2)*sin(m)
    # (exact on the clamped domain).  s is pre-folded into the constants.
    c = jnp.clip(acc * inv_wn, -1.0 + 1e-07, 1.0 - 1e-07)
    sin_theta = jnp.sqrt(1.0 - c * c)
    o_ref[...] = (c * s_cos_m - sin_theta * s_sin_m).astype(o_ref.dtype)


def arcface_forward(
    x,
    W,
    s,
    m,
    *,
    tm=256,
    tn=512,
    mxu_dtype=jnp.bfloat16,
    force_batch_tiling=False,
):
    B, D_in = x.shape
    D_in2, D_out = W.shape
    assert D_in == D_in2, (x.shape, W.shape)

    s_cos_m = float(s) * math.cos(m)
    s_sin_m = float(s) * math.sin(m)

    # --- x normalized once in the wrapper (tiny B x D_in work), cast once to
    # the MXU dtype so the kernel never re-normalizes rows and the x HBM
    # stream is halved in bf16. ---
    x32 = x.astype(jnp.float32)
    xn = x32 / jnp.maximum(
        jnp.sqrt(jnp.sum(x32 * x32, axis=1, keepdims=True)), 1e-12
    )
    xn = xn.astype(mxu_dtype)

    x_item = jnp.dtype(mxu_dtype).itemsize
    w_item = W.dtype.itemsize

    # Generation-aware scoped-VMEM budget: ~48 MiB on v7x, ~96 MiB on v5e/v6e.
    vmem_budget = int(0.75 * _vmem_capacity_bytes())

    tn = _round_up(min(tn, _round_up(D_out, 128)), 128)
    Bp_full = _round_up(B, 8)

    # --- Path selection: keep the whole (padded) batch resident if it fits. ---
    use_resident_x = not force_batch_tiling
    if use_resident_x:
        tn_eff = tn
        while (
            tn_eff > 128
            and _bytes_needed(Bp_full, D_in, tn_eff, x_item, w_item) > vmem_budget
        ):
            tn_eff = max(128, _round_up(tn_eff // 2, 128))
        if _bytes_needed(Bp_full, D_in, tn_eff, x_item, w_item) <= vmem_budget:
            tn = tn_eff
            tm = Bp_full
        else:
            use_resident_x = False

    if not use_resident_x:
        tm = _round_up(min(tm, Bp_full), 8)
        while tn > 128 and _bytes_needed(tm, D_in, tn, x_item, w_item) > vmem_budget:
            tn = max(128, _round_up(tn // 2, 128))
        while tm > 8 and _bytes_needed(tm, D_in, tn, x_item, w_item) > vmem_budget:
            tm = max(8, _round_up(tm // 2, 8))

    Bp = _round_up(B, tm)
    Np = _round_up(D_out, tn)

    # Zero padding is benign: padded xn rows are exactly 0 (already normalized),
    # padded W columns give acc = 0 -> finite outputs that are sliced away.
    xn_p = xn if Bp == B else jnp.pad(xn, ((0, Bp - B), (0, 0)))
    w_p = W if Np == D_out else jnp.pad(W, ((0, 0), (0, Np - D_out)))

    kernel = functools.partial(
        arcface_kernel, s_cos_m=s_cos_m, s_sin_m=s_sin_m, mxu_dtype=mxu_dtype
    )

    need = _bytes_needed(tm, D_in, tn, x_item, w_item)
    vmem_limit = int(min(max(need + (8 << 20), 32 << 20), vmem_budget))
    vmem_limit = max(vmem_limit, need)

    n_class_tiles = Np // tn
    n_batch_tiles = Bp // tm

    cost = pl.CostEstimate(
        flops=int(2 * Bp * D_in * Np),
        transcendentals=int(Bp * Np + n_class_tiles * n_batch_tiles * tn),
        bytes_accessed=int(
            xn_p.size * x_item * (1 if use_resident_x else n_class_tiles)
            + w_p.size * w_item  # W streamed exactly once
            + Bp * Np * 4
        ),
    )

    if use_resident_x:
        # 1-D grid over class tiles; x block index is constant -> DMA'd once
        # and held in VMEM; W is the sole streamed operand (double-buffered).
        grid = (n_class_tiles,)
        in_specs = [
            pl.BlockSpec((tm, D_in), lambda j: (0, 0)),
            pl.BlockSpec((D_in, tn), lambda j: (0, j)),
        ]
        out_specs = pl.BlockSpec((tm, tn), lambda j: (0, j))
        # Class axis parallel: v7x megacore shards disjoint halves of the W
        # stream across its two TensorCores.
        dim_sem = ("parallel",)
    else:
        # Fallback 2-D grid: batch innermost so the W block index is constant
        # across consecutive steps (Pallas skips the redundant W DMA).
        grid = (n_class_tiles, n_batch_tiles)
        in_specs = [
            pl.BlockSpec((tm, D_in), lambda j, i: (i, 0)),
            pl.BlockSpec((D_in, tn), lambda j, i: (0, j)),
        ]
        out_specs = pl.BlockSpec((tm, tn), lambda j, i: (i, j))
        # Batch axis "arbitrary": never shard it across TCs (that would
        # duplicate the dominant W HBM stream on v7x).
        dim_sem = ("parallel", "arbitrary")

    out = pl.pallas_call(
        kernel,
        out_shape=jax.ShapeDtypeStruct((Bp, Np), jnp.float32),
        grid=grid,
        in_specs=in_specs,
        out_specs=out_specs,
        compiler_params=pltpu.CompilerParams(
            dimension_semantics=dim_sem,
            vmem_limit_bytes=vmem_limit,
        ),
        cost_estimate=cost,
    )(xn_p, w_p)

    return out[:B, :D_out]


def arcface_reference(x, W, s, m):
    xn = x / jnp.maximum(jnp.linalg.norm(x, axis=1, keepdims=True), 1e-12)
    wn = W / jnp.maximum(jnp.linalg.norm(W, axis=0, keepdims=True), 1e-12)
    cosine = xn @ wn
    theta = jnp.arccos(jnp.clip(cosine, -1.0 + 1e-07, 1.0 - 1e-07))
    return s * jnp.cos(theta + m)


if __name__ == "__main__":
    batch, in_dim, out_dim = 16, 64, 384
    s_scale, margin = 30.0, 0.5

    key = jax.random.PRNGKey(0)
    kx, kw = jax.random.split(key)
    x = jax.random.normal(kx, (batch, in_dim), dtype=jnp.float32)

    # Deterministic kaiming_uniform_-style init for W (in_dim, out_dim):
    # gain = sqrt(2), fan_in = out_dim -> bound = sqrt(6 / fan_in)
    bound = math.sqrt(6.0 / out_dim)
    W = jax.random.uniform(
        kw, (in_dim, out_dim), minval=-bound, maxval=bound, dtype=jnp.float32
    )

    ref = arcface_reference(x, W, s_scale, margin)

    # 1) Resident-x 1-D grid, f32 MXU path, multiple class tiles (384/128 = 3).
    out_f32 = arcface_forward(x, W, s_scale, margin, tn=128, mxu_dtype=jnp.float32)
    out_f32 = jax.block_until_ready(out_f32)
    assert out_f32.shape == (batch, out_dim)
    assert jnp.allclose(out_f32, ref, atol=1e-4, rtol=1e-4), float(
        jnp.max(jnp.abs(out_f32 - ref))
    )

    # 2) Default bf16-MXU path (f32 accumulation, single class tile).
    out_bf16 = arcface_forward(x, W, s_scale, margin)
    out_bf16 = jax.block_until_ready(out_bf16)
    assert out_bf16.shape == (batch, out_dim)
    assert jnp.allclose(out_bf16, ref, atol=3e-1, rtol=2e-2), float(
        jnp.max(jnp.abs(out_bf16 - ref))
    )

    # 3) Ragged shapes -> exercises tail padding on both axes.
    x_r, W_r = x[:12], W[:, :200]
    out_r = arcface_forward(x_r, W_r, s_scale, margin, tn=128, mxu_dtype=jnp.float32)
    out_r = jax.block_until_ready(out_r)
    ref_r = arcface_reference(x_r, W_r, s_scale, margin)
    assert out_r.shape == (12, 200)
    assert jnp.allclose(out_r, ref_r, atol=1e-4, rtol=1e-4), float(
        jnp.max(jnp.abs(out_r - ref_r))
    )

    # 4) Forced 2-D fallback (batch tiled, batch-innermost grid).
    out_2d = arcface_forward(
        x, W, s_scale, margin, tm=8, tn=128, mxu_dtype=jnp.float32,
        force_batch_tiling=True,
    )
    out_2d = jax.block_until_ready(out_2d)
    assert out_2d.shape == (batch, out_dim)
    assert jnp.allclose(out_2d, ref, atol=1e-4, rtol=1e-4), float(
        jnp.max(jnp.abs(out_2d - ref))
    )

    print("KERNEL_OK")
</pallas_src>

<mosaic_0001>
module attributes {stable_mosaic.version = 11 : i64} {
  func.func @arcface_kernel(%arg0: i32, %arg1: memref<16x64xf32, #tpu.memory_space<vmem>>, %arg2: memref<64x128xf32, #tpu.memory_space<vmem>>, %arg3: memref<16x128xf32, #tpu.memory_space<vmem>>) attributes {dimension_semantics = [#tpu.dimension_semantics<parallel>], iteration_bounds = array<i64: 3>, scalar_prefetch = 0 : i64, scratch_operands = 0 : i64, tpu.core_type = #tpu.core_type<tc>, window_params = [{pipeline_mode = #tpu.pipeline_mode<synchronous>, transform_indices = @transform_0, window_bounds = array<i64: 16, 64>}, {transform_indices = @transform_1, window_bounds = array<i64: 64, 128>}, {transform_indices = @transform_2, window_bounds = array<i64: 16, 128>}]} {
    %c0 = arith.constant 0 : index
    %c0_0 = arith.constant 0 : index
    %0 = vector.load %arg2[%c0, %c0_0] : memref<64x128xf32, #tpu.memory_space<vmem>>, vector<64x128xf32>
    %1 = arith.mulf %0, %0 : vector<64x128xf32>
    %cst = arith.constant dense<0.000000e+00> : vector<128xf32>
    %2 = vector.multi_reduction <add>, %1, %cst [0] : vector<64x128xf32> to vector<128xf32>
    %3 = vector.shape_cast %2 : vector<128xf32> to vector<1x128xf32>
    %4 = math.sqrt %3 : vector<1x128xf32>
    %cst_1 = arith.constant 9.99999996E-13 : f32
    %5 = vector.broadcast %cst_1 : f32 to vector<1x128xf32>
    %6 = arith.maximumf %4, %5 : vector<1x128xf32>
    %cst_2 = arith.constant 1.000000e+00 : f32
    %7 = vector.broadcast %cst_2 : f32 to vector<1x128xf32>
    %8 = arith.divf %7, %6 : vector<1x128xf32>
    %c0_3 = arith.constant 0 : index
    %c0_4 = arith.constant 0 : index
    %9 = vector.load %arg1[%c0_3, %c0_4] : memref<16x64xf32, #tpu.memory_space<vmem>>, vector<16x64xf32>
    %cst_5 = arith.constant dense<0.000000e+00> : vector<16x128xf32>
    %10 = tpu.matmul %9, %0, %cst_5 {dimension_numbers = #tpu.dot_dimension_numbers<[1], [0], [0], [1], [0, 0, 1, 1], [], []>} : vector<16x64xf32>, vector<64x128xf32>, vector<16x128xf32> -> vector<16x128xf32>
    %11 = vector.broadcast %8 : vector<1x128xf32> to vector<16x128xf32>
    %12 = arith.mulf %10, %11 : vector<16x128xf32>
    %cst_6 = arith.constant -0.99999988 : f32
    %cst_7 = arith.constant 0.99999988 : f32
    %13 = vector.broadcast %cst_6 : f32 to vector<16x128xf32>
    %14 = arith.maximumf %13, %12 : vector<16x128xf32>
    %15 = vector.broadcast %cst_7 : f32 to vector<16x128xf32>
    %16 = arith.minimumf %15, %14 : vector<16x128xf32>
    %17 = arith.mulf %16, %16 : vector<16x128xf32>
    %cst_8 = arith.constant 1.000000e+00 : f32
    %18 = vector.broadcast %cst_8 : f32 to vector<16x128xf32>
    %19 = arith.subf %18, %17 : vector<16x128xf32>
    %20 = math.sqrt %19 : vector<16x128xf32>
    %cst_9 = arith.constant 26.3274765 : f32
    %21 = vector.broadcast %cst_9 : f32 to vector<16x128xf32>
    %22 = arith.mulf %16, %21 : vector<16x128xf32>
    %cst_10 = arith.constant 14.3827658 : f32
    %23 = vector.broadcast %cst_10 : f32 to vector<16x128xf32>
    %24 = arith.mulf %20, %23 : vector<16x128xf32>
    %25 = arith.subf %22, %24 : vector<16x128xf32>
    %c0_11 = arith.constant 0 : index
    %c0_12 = arith.constant 0 : index
    %26 = vector.load %arg3[%c0_11, %c0_12] : memref<16x128xf32, #tpu.memory_space<vmem>>, vector<16x128xf32>
    tpu.vector_store %arg3[%c0_11, %c0_12], %25 {strides = array<i32>} : memref<16x128xf32, #tpu.memory_space<vmem>>, vector<16x128xf32>,
    return
  }
  func.func @transform_0(%arg0: i32) -> (i32, i32) {
    %c0_i32 = arith.constant 0 : i32
    %c0_i32_0 = arith.constant 0 : i32
    %c0_i32_1 = arith.constant 0 : i32
    return %c0_i32, %c0_i32_0 : i32, i32
  }
  func.func @transform_1(%arg0: i32) -> (i32, i32) {
    %c0_i32 = arith.constant 0 : i32
    %c0_i32_0 = arith.constant 0 : i32
    return %c0_i32, %arg0 : i32, i32
  }
  func.func @transform_2(%arg0: i32) -> (i32, i32) {
    %c0_i32 = arith.constant 0 : i32
    %c0_i32_0 = arith.constant 0 : i32
    return %c0_i32, %arg0 : i32, i32
  }
}

</mosaic_0001>

<llo_original>
// kernel: tpu_custom_call.1
$region0: #{tpu_custom_call.1}
  #allocation0 [shape = 'u32[]', space=smem, size = 0x4, offset = 0x4, fixed_abs, tag = 'smem constant byte address 0x4 - core index']
  #allocation1 [shape = 'u32[144,128]{1,0:T(1,128)}', space=vmem, size = 0x12000, scoped, tag = 'internal scratch']
  %s0 = inlined_call_operand.hbm [shape: f32[16,64], index: 0, kind: input, shape index: {}]
  %s1 = inlined_call_operand.hbm [shape: f32[64,384], index: 1, kind: input, shape index: {}]
  %s2 = inlined_call_operand.hbm [shape: f32[16,384], index: 2, kind: output, shape index: {}]
  %s3 = sld [smem:[#allocation0]]
  $region49: #{tpu_custom_call.1} parent=0
    _
  %s5 = ssub.s32 1, %s3
  %s6 = scalar_select 0, %s5, %s3
  $region1: #{tpu_custom_call.1} parent=0
    #allocation2 [shape = 'u8[8192]{0}', space=vmem, size = 0x2000, scoped, tag = 'input window, operand 0, single buffered']
    #allocation3 [shape = 's32[2]{0}', space=sflag, size = 0x8, scoped, tag = 'scoped memory for tpu_custom_call.1']
    #allocation4 [shape = 's32[2]{0}', space=sflag, size = 0x8, scoped, tag = 'scoped memory for tpu_custom_call.1']
    #allocation5 [shape = 'u8[65536]{0}', space=vmem, size = 0x10000, scoped, tag = 'input window, operand 1']
    #allocation6 [shape = 's32[2]{0}', space=sflag, size = 0x8, scoped, tag = 'scoped memory for tpu_custom_call.1']
    #allocation7 [shape = 'u8[16384]{0}', space=vmem, size = 0x4000, scoped, tag = 'output window, operand 0']
    %7 = vsyncpa [#allocation3], 0
    %8 = vsyncpa [#allocation6], 0
    %s9 = scalar_lea.sflag [#allocation6], 1
    %10 = vsyncpa %s9, 0
    %11 = vsyncpa [#allocation4], 0
    %s12 = scalar_lea.sflag [#allocation4], 1
    %13 = vsyncpa %s12, 0
    loop: start=0, step=1, limit=5
    $region2: #{tpu_custom_call.1} parent=1 // loop_pre_header
      _
    $region3: #{tpu_custom_call.1} parent=1 // loop_header
      %s15 = sphi 0, %s19
      %p16 = scmp.ge.s32.totalorder %s15, 5
      %s23 = sphi 0, %s23
      %s25 = sphi 0, %s23
      %s26 = sphi 0, %s25
      %s40 = sphi 0, %s26
      %s46 = sphi 0, %s48
      %s49 = sphi 0, %s46
      %s50 = sphi 0, %s49
      %s66 = sphi 0, %s50
      %s72 = sphi 0, %s74
      %s75 = sphi 0, %s72
      %s76 = sphi 0, %s75
      %s92 = sphi 0, %s76
    $region4: #{tpu_custom_call.1} parent=1 // loop_header_branch
      %18 = sbr.rel (%p16) target = $region8
    $region5: #{tpu_custom_call.1} parent=1 // loop_body
      %s20 = ssub.s32 %s15, 1
      %s21 = ssub.s32 %s15, 2
      %s22 = sadd.s32 %s15, 1
      %s24 = sadd.s32 %s23, 1
      %p27 = scmp.eq.s32.totalorder %s15, 2
      %p28 = scmp.ne.s32.totalorder %s23, %s25
      %p29 = scmp.eq.s32.totalorder %s15, 0
      %p30 = por %p28, %p29
      %p31 = scmp.ne.s32.totalorder %s23, %s25
      %p32 = scmp.eq.s32.totalorder %s20, 2
      %p33 = por %p31, %p32
      %p34 = scmp.ne.s32.totalorder %s25, %s26
      %p35 = scmp.eq.s32.totalorder %s20, 0
      %p36 = por %p34, %p35
      %p37 = scmp.ne.s32.totalorder %s25, %s26
      %p38 = scmp.eq.s32.totalorder %s21, 2
      %p39 = por %p37, %p38
      %p41 = scmp.ne.s32.totalorder %s26, %s40
      %p42 = scmp.eq.s32.totalorder %s21, 0
      %p43 = por %p41, %p42
      %s44 = ssub.s32 %s15, %s22
      %p45 = scmp.eq.s32.totalorder %s44, 0
      %s47 = sadd.s32 %s46, 1
      %s48 = scalar_select %p45, %s46, %s47
      %p51 = pneg %p45
      %p52 = scmp.eq.s32.totalorder %s15, 2
      %p53 = por %p51, %p52
      %p54 = scmp.ne.s32.totalorder %s46, %s49
      %p55 = scmp.eq.s32.totalorder %s15, 0
      %p56 = por %p54, %p55
      %p57 = scmp.ne.s32.totalorder %s46, %s49
      %p58 = scmp.eq.s32.totalorder %s20, 2
      %p59 = por %p57, %p58
      %p60 = scmp.ne.s32.totalorder %s49, %s50
      %p61 = scmp.eq.s32.totalorder %s20, 0
      %p62 = por %p60, %p61
      %p63 = scmp.ne.s32.totalorder %s49, %s50
      %p64 = scmp.eq.s32.totalorder %s21, 2
      %p65 = por %p63, %p64
      %p67 = scmp.ne.s32.totalorder %s50, %s66
      %p68 = scmp.eq.s32.totalorder %s21, 0
      %p69 = por %p67, %p68
      %s70 = ssub.s32 %s15, %s22
      %p71 = scmp.eq.s32.totalorder %s70, 0
      %s73 = sadd.s32 %s72, 1
      %s74 = scalar_select %p71, %s72, %s73
      %p77 = pneg %p71
      %p78 = scmp.eq.s32.totalorder %s15, 2
      %p79 = por %p77, %p78
      %p80 = scmp.ne.s32.totalorder %s72, %s75
      %p81 = scmp.eq.s32.totalorder %s15, 0
      %p82 = por %p80, %p81
      %p83 = scmp.ne.s32.totalorder %s72, %s75
      %p84 = scmp.eq.s32.totalorder %s20, 2
      %p85 = por %p83, %p84
      %p86 = scmp.ne.s32.totalorder %s75, %s76
      %p87 = scmp.eq.s32.totalorder %s20, 0
      %p88 = por %p86, %p87
      %p89 = scmp.ne.s32.totalorder %s75, %s76
      %p90 = scmp.eq.s32.totalorder %s21, 2
      %p91 = por %p89, %p90
      %p93 = scmp.ne.s32.totalorder %s76, %s92
      %p94 = scmp.eq.s32.totalorder %s21, 0
      %p95 = por %p93, %p94
      %p96 = scmp.le.s32.totalorder 1, %s15
      %p97 = scmp.lt.s32.totalorder %s15, 4
      %p98 = pnand %p96, %p97
      %p99 = pneg %p98
      // Predicated region
      $region9: #{tpu_custom_call.1} parent=5 // pred_check
        _
      $region10: #{tpu_custom_call.1} parent=5 // pred_check_branch
        %101 = sbr.rel (%p98) target = $region12
      $region11: #{tpu_custom_call.1} parent=5 // pred_region
        %s102 = ssub.s32 %s15, 1
        // Predicated region
        $region13: #{tpu_custom_call.1} parent=11 // pred_check
          %p103 = pneg %p36
        $region14: #{tpu_custom_call.1} parent=11 // pred_check_branch
          %105 = sbr.rel (%p103) target = $region16
        $region15: #{tpu_custom_call.1} parent=11 // pred_region
          %s107 = ssub.s32 256, 256
          %108 = vsyncadd [#allocation3], %s107
          %s109 = sshll.u32 [#allocation2], 4
          %s110 = int_to_ptr.vmem [resolvable:$true] %s109
          %115 = dma.hbm_to_vmem [thread:$0]  %s0, 256, %s110, [#allocation3], 128, 128, 8
        $region16: #{tpu_custom_call.1} parent=11 // pred_fallthru
          _
      $region12: #{tpu_custom_call.1} parent=5 // pred_fallthru
        _
      %p116 = scmp.lt.s32.totalorder %s15, 3
      // Predicated region
      $region17: #{tpu_custom_call.1} parent=5 // pred_check
        %p117 = pneg %p116
      $region18: #{tpu_custom_call.1} parent=5 // pred_check_branch
        %119 = sbr.rel (%p117) target = $region20
      $region19: #{tpu_custom_call.1} parent=5 // pred_region
        // Predicated region
        $region21: #{tpu_custom_call.1} parent=19 // pred_check
          %p120 = pneg %p56
        $region22: #{tpu_custom_call.1} parent=19 // pred_check_branch
          %122 = sbr.rel (%p120) target = $region24
        $region23: #{tpu_custom_call.1} parent=19 // pred_region
          %s123 = sand.u32 %s46, 1
          %s124 = scalar_lea.sflag [#allocation6], %s123
          %s125 = sand.u32 %s46, 1
          %s126 = smul.addr %s125, 64
          %s127 = scalar_lea.vmem [#allocation5], %s126
          %s129 = ssub.s32 1024, 1024
          %130 = vsyncadd %s124, %s129
          %s131 = smul.addr %s15, 128
          %s132 = scalar_lea.hbm %s1, %s131
          %s133 = sshll.u32 %s127, 4
          %s134 = int_to_ptr.vmem [resolvable:$true] %s133
          %139 = dma.hbm_to_vmem [thread:$0]  %s132, 1024, %s134, %s124, 384, 128, 8
        $region24: #{tpu_custom_call.1} parent=19 // pred_fallthru
          _
      $region20: #{tpu_custom_call.1} parent=5 // pred_fallthru
        _
      %p140 = scmp.le.s32.totalorder 1, %s15
      %p141 = scmp.lt.s32.totalorder %s15, 4
      %p142 = pnand %p140, %p141
      %p143 = pneg %p142
      // Predicated region
      $region25: #{tpu_custom_call.1} parent=5 // pred_check
        _
      $region26: #{tpu_custom_call.1} parent=5 // pred_check_branch
        %145 = sbr.rel (%p142) target = $region28
      $region27: #{tpu_custom_call.1} parent=5 // pred_region
        %s146 = ssub.s32 %s15, 1
        // Predicated region
        $region29: #{tpu_custom_call.1} parent=27 // pred_check
          %p147 = pneg %p36
        $region30: #{tpu_custom_call.1} parent=27 // pred_check_branch
          %149 = sbr.rel (%p147) target = $region32
        $region31: #{tpu_custom_call.1} parent=27 // pred_region
          %150 = dma.done [#allocation3], 256
        $region32: #{tpu_custom_call.1} parent=27 // pred_fallthru
          _
        %s151 = sand.u32 %s49, 1
        %s152 = scalar_lea.sflag [#allocation6], %s151
        %s153 = sand.u32 %s49, 1
        %s154 = smul.addr %s153, 64
        %s155 = scalar_lea.vmem [#allocation5], %s154
        // Predicated region
        $region33: #{tpu_custom_call.1} parent=27 // pred_check
          %p156 = pneg %p62
        $region34: #{tpu_custom_call.1} parent=27 // pred_check_branch
          %158 = sbr.rel (%p156) target = $region36
        $region35: #{tpu_custom_call.1} parent=27 // pred_region
          %159 = dma.done %s152, 1024
        $region36: #{tpu_custom_call.1} parent=27 // pred_fallthru
          _
        %p160 = pneg %p36
        %p161 = pneg %p33
        %s162 = sand.u32 %s49, 1
        %s163 = scalar_lea.sflag [#allocation6], %s162
        %s164 = sand.u32 %s49, 1
        %s165 = smul.addr %s164, 64
        %s166 = scalar_lea.vmem [#allocation5], %s165
        %p167 = pneg %p62
        %p168 = pneg %p59
        %p169 = pneg %p88
        %p170 = pneg %p85
        %s171 = sand.u32 %s75, 1
        %s172 = scalar_lea.sflag [#allocation4], %s171
        %s173 = sand.u32 %s75, 1
        %s174 = smul.addr %s173, 16
        %s175 = scalar_lea.vmem [#allocation7], %s174
        %v176 = vld [vmem:[%s155] sm:$0xff]
        %v177 = vld [vmem:[%s155 + $0x8] sm:$0xff]
        %v178 = vld [vmem:[%s155 + $0x10] sm:$0xff]
        %v179 = vld [vmem:[%s155 + $0x18] sm:$0xff]
        %v180 = vld [vmem:[%s155 + $0x20] sm:$0xff]
        %v181 = vld [vmem:[%s155 + $0x28] sm:$0xff]
        %v182 = vld [vmem:[%s155 + $0x30] sm:$0xff]
        %v183 = vld [vmem:[%s155 + $0x38] sm:$0xff]
        %v184 = vmul.f32 %v176, %v176
        %v185 = vmul.f32 %v177, %v177
        %v186 = vmul.f32 %v178, %v178
        %v187 = vmul.f32 %v179, %v179
        %v188 = vmul.f32 %v180, %v180
        %v189 = vmul.f32 %v181, %v181
        %v190 = vmul.f32 %v182, %v182
        %v191 = vmul.f32 %v183, %v183
        %v192 = vadd.f32 %v184, %v185
        %v193 = vadd.f32 %v192, %v186
        %v194 = vadd.f32 %v193, %v187
        %v195 = vadd.f32 %v194, %v188
        %v196 = vadd.f32 %v195, %v189
        %v197 = vadd.f32 %v196, %v190
        %v198 = vadd.f32 %v197, %v191
        %v199 = vrot.slane %v198, 4
        %v200 = vadd.f32 %v198, %v199
        %v201 = vrot.slane %v200, 2
        %v202 = vadd.f32 %v200, %v201
        %v203 = vrot.slane %v202, 1
        %v204 = vadd.f32 %v202, %v203
        %v205 = vrsqrt.pop %v204
        %v206 = vmul.f32 %v204, %v205
        %vm207 = vcmp.eq.f32.partialorder %v204, inf
        %v208 = vsel %vm207, %v204, %v206
        %vm209 = vcmp.eq.f32.partialorder %v204, 0.0
        %v210 = vand.u32 %v204, 2147483648
        %v211 = vsel %vm209, %v210, %v208
        %v212 = vmax.f32 %v211, 1e-12
        %v213 = vrcp.pop %v212
        %v214 = vmul.f32 1.0, %v213
        %v215 = vld [vmem:[#allocation2] sm:$0xff]
        %v216 = vld [vmem:[#allocation2 + $0x8] sm:$0xff]
        %vm217 = vcmask 523264
        %v219 = vsel %vm217, %v215, 0
        %v222 = vsel %vm217, %v216, 0
        %224 = vmatprep.subr.mxu0 0.0
        %225 = vmatpush1.msra.mxu0 %v176
        %226 = vmatprep.subr.mxu0 0.0
        %227 = vmatpush1.msra.mxu0 %v177
        %228 = vmatprep.subr.mxu0 0.0
        %229 = vmatpush1.msra.mxu0 %v178
        %230 = vmatprep.subr.mxu0 0.0
        %231 = vmatpush1.msra.mxu0 %v179
        %232 = vmatprep.subr.mxu0 0.0
        %233 = vmatpush1.msra.mxu0 %v180
        %234 = vmatprep.subr.mxu0 0.0
        %235 = vmatpush1.msra.mxu0 %v181
        %236 = vmatprep.subr.mxu0 0.0
        %237 = vmatpush1.msra.mxu0 %v182
        %238 = vmatprep.subr.mxu0 0.0
        %239 = vmatpush1.msra.mxu0 %v183
        %240 = vmatprep.subr.mxu0 0.0
        %241 = vmatpush1.msra.mxu0 0.0
        %242 = vmatprep.subr.mxu0 0.0
        %243 = vmatpush1.msra.mxu0 0.0
        %244 = vmatprep.subr.mxu0 0.0
        %245 = vmatpush1.msra.mxu0 0.0
        %246 = vmatprep.subr.mxu0 0.0
        %247 = vmatpush1.msra.mxu0 0.0
        %248 = vmatprep.subr.mxu0 0.0
        %249 = vmatpush1.msra.mxu0 0.0
        %250 = vmatprep.subr.mxu0 0.0
        %251 = vmatpush1.msra.mxu0 0.0
        %252 = vmatprep.subr.mxu0 0.0
        %253 = vmatpush1.msra.mxu0 0.0
        %254 = vmatprep.subr.mxu0 0.0
        %255 = vmatpush1.msra.mxu0 0.0
        %256 = vmatprep.subr.mxu0 0.0
        %257 = vmatpush1.msra.mxu0 0.0
        %258 = vmatprep.subr.mxu0 0.0
        %259 = vmatpush1.msra.mxu0 0.0
        %260 = vmatprep.subr.mxu0 0.0
        %261 = vmatpush1.msra.mxu0 0.0
        %262 = vmatprep.subr.mxu0 0.0
        %263 = vmatpush1.msra.mxu0 0.0
        %264 = vmatprep.subr.mxu0 0.0
        %265 = vmatpush1.msra.mxu0 0.0
        %266 = vmatprep.subr.mxu0 0.0
        %267 = vmatpush1.msra.mxu0 0.0
        %268 = vmatprep.subr.mxu0 0.0
        %269 = vmatpush1.msra.mxu0 0.0
        %270 = vmatprep.subr.mxu0 0.0
        %271 = vmatpush1.msra.mxu0 0.0
        %272 = vmatprep.subr.mxu0 0.0
        %273 = vmatpush1.msra.mxu0 0.0
        %274 = vmatprep.subr.mxu0 0.0
        %275 = vmatpush1.msra.mxu0 0.0
        %276 = vmatprep.subr.mxu0 0.0
        %277 = vmatpush1.msra.mxu0 0.0
        %278 = vmatprep.subr.mxu0 0.0
        %279 = vmatpush1.msra.mxu0 0.0
        %280 = vmatprep.subr.mxu0 0.0
        %281 = vmatpush1.msra.mxu0 0.0
        %282 = vmatprep.subr.mxu0 0.0
        %283 = vmatpush1.msra.mxu0 0.0
        %284 = vmatprep.subr.mxu0 0.0
        %285 = vmatpush1.msra.mxu0 0.0
        %286 = vmatprep.subr.mxu0 0.0
        %287 = vmatpush1.msra.mxu0 0.0
        %288 = vmatprep.mubr.f32.mxu0 0.0
        %289 = vmatmul.mubr.f32.gmra.mrb[0].mxu0 %v219
        %v290 = vpop.f32.mrb[0].mxu0
        %v291 = vadd.f32 0.0, %v290
        %v292 = vpop.f32.mrb[0].mxu0
        %293 = vmatprep.mubr.f32.mxu0 0.0
        %294 = vmatmul.mubr.f32.gmra.mrb[0].mxu0 %v222
        %v295 = vpop.f32.mrb[0].mxu0
        %v296 = vadd.f32 0.0, %v295
        %v297 = vpop.f32.mrb[0].mxu0
        %298 = vdwg.mxu0
        %v299 = vmul.f32 %v291, %v214
        %v300 = vmul.f32 %v296, %v214
        %v301 = vmax.f32 %v299, -0.9999999
        %v302 = vmax.f32 %v300, -0.9999999
        %v303 = vmin.f32 %v301, 0.9999999
        %v304 = vmin.f32 %v302, 0.9999999
        %v305 = vmul.f32 %v303, %v303
        %v306 = vmul.f32 %v304, %v304
        %v307 = vsub.f32 1.0, %v305
        %v308 = vsub.f32 1.0, %v306
        %v309 = vrsqrt.pop %v307
        %v310 = vmul.f32 %v307, %v309
        %vm311 = vcmp.eq.f32.partialorder %v307, inf
        %v312 = vsel %vm311, %v307, %v310
        %vm313 = vcmp.eq.f32.partialorder %v307, 0.0
        %v314 = vand.u32 %v307, 2147483648
        %v315 = vsel %vm313, %v314, %v312
        %v316 = vrsqrt.pop %v308
        %v317 = vmul.f32 %v308, %v316
        %vm318 = vcmp.eq.f32.partialorder %v308, inf
        %v319 = vsel %vm318, %v308, %v317
        %vm320 = vcmp.eq.f32.partialorder %v308, 0.0
        %v321 = vand.u32 %v308, 2147483648
        %v322 = vsel %vm320, %v321, %v319
        %v323 = vmul.f32 %v303, 26.327477
        %v324 = vmul.f32 %v304, 26.327477
        %v325 = vmul.f32 %v315, 14.382766
        %v326 = vmul.f32 %v322, 14.382766
        %v327 = vsub.f32 %v323, %v325
        %v328 = vsub.f32 %v324, %v326
        %329 = vst [vmem:[%s175] sm:$0xff] %v327
        %330 = vst [vmem:[%s175 + $0x8] sm:$0xff] %v328
        %s331 = sand.u32 %s75, 1
        %s332 = scalar_lea.sflag [#allocation4], %s331
        %s333 = sand.u32 %s75, 1
        %s334 = smul.addr %s333, 16
        %s335 = scalar_lea.vmem [#allocation7], %s334
        // Predicated region
        $region37: #{tpu_custom_call.1} parent=27 // pred_check
          %p336 = pneg %p85
        $region38: #{tpu_custom_call.1} parent=27 // pred_check_branch
          %338 = sbr.rel (%p336) target = $region40
        $region39: #{tpu_custom_call.1} parent=27 // pred_region
          %s340 = ssub.s32 256, 256
          %341 = vsyncadd %s332, %s340
          %s342 = smul.addr %s20, 128
          %s343 = scalar_lea.hbm %s2, %s342
          %s344 = sshll.u32 %s335, 4
          %s345 = int_to_ptr.vmem [resolvable:$true] %s344
          %350 = dma.vmem_to_hbm [thread:$0]  %s345, 256, %s343, %s332, 128, 384, 8
        $region40: #{tpu_custom_call.1} parent=27 // pred_fallthru
          _
      $region28: #{tpu_custom_call.1} parent=5 // pred_fallthru
        _
      %p351 = scmp.le.s32.totalorder 2, %s15
      // Predicated region
      $region41: #{tpu_custom_call.1} parent=5 // pred_check
        %p352 = pneg %p351
      $region42: #{tpu_custom_call.1} parent=5 // pred_check_branch
        %354 = sbr.rel (%p352) target = $region44
      $region43: #{tpu_custom_call.1} parent=5 // pred_region
        %s355 = ssub.s32 %s15, 2
        // Predicated region
        $region45: #{tpu_custom_call.1} parent=43 // pred_check
          %p356 = pneg %p91
        $region46: #{tpu_custom_call.1} parent=43 // pred_check_branch
          %358 = sbr.rel (%p356) target = $region48
        $region47: #{tpu_custom_call.1} parent=43 // pred_region
          %s359 = sand.u32 %s76, 1
          %s360 = scalar_lea.sflag [#allocation4], %s359
          %s361 = sand.u32 %s76, 1
          %s362 = smul.addr %s361, 16
          %s363 = scalar_lea.vmem [#allocation7], %s362
          %364 = dma.done %s360, 256
        $region48: #{tpu_custom_call.1} parent=43 // pred_fallthru
          _
      $region44: #{tpu_custom_call.1} parent=5 // pred_fallthru
        _
    $region6: #{tpu_custom_call.1} parent=1 // loop_footer
      %s19 = sadd.s32 1, %s15
    $region7: #{tpu_custom_call.1} parent=1 // loop_footer_branch
      %14 = sbr.rel target = $region3
    $region8: #{tpu_custom_call.1} parent=1 // loop_exit
      _
    %365 = vsyncpa [#allocation3], 1
    %s366 = scalar_lea.sflag [#allocation3], 1
    %367 = vsyncpa %s366, 1
    %368 = vsyncpa [#allocation6], 1
    %s369 = scalar_lea.sflag [#allocation6], 1
    %370 = vsyncpa %s369, 1
    %371 = vsyncpa [#allocation4], 1
    %s372 = scalar_lea.sflag [#allocation4], 1
    %373 = vsyncpa %s372, 1

</llo_original>
